<compile_context>
chip_gen: v7x
topology: tpu7x:2x2x1
jax: 0.10.0
libtpu: 0.0.40
codegen_flags: <defaults>
</compile_context>

<pallas_src>
import jax
import jax.numpy as jnp
from jax.experimental import pallas as pl
from jax.experimental.pallas import tpu as pltpu


def _round_up(x, m):
    return ((x + m - 1) // m) * m


def _value_mlp_kernel(x_ref, w1_ref, b1_ref, w2_ref, b2_ref, w3_ref, b3_ref,
                      o_ref):
    # Layer 1: bf16 MXU matmul, f32 accumulation; bias + ReLU in f32 (VPU).
    x = x_ref[...].astype(jnp.bfloat16)
    h1 = jnp.dot(x, w1_ref[...], preferred_element_type=jnp.float32)
    h1 = jnp.maximum(h1 + b1_ref[...], 0.0)

    # Layer 2: bf16 MXU matmul, f32 accumulation; bias + ReLU in f32.
    h2 = jnp.dot(h1.astype(jnp.bfloat16), w2_ref[...],
                 preferred_element_type=jnp.float32)
    h2 = jnp.maximum(h2 + b2_ref[...], 0.0)

    # Layer 3 (H -> 1): replace the 1-column matmul with a VPU multiply +
    # lane reduction (runs in VPU/XLU slots that are idle while the MXU owns
    # layers 1/2).  w3 is passed as a (1, H) f32 row; b3 is a scalar in SMEM.
    out = jnp.sum(h2 * w3_ref[...], axis=-1, keepdims=True) + b3_ref[0, 0]

    o_ref[...] = out.astype(o_ref.dtype)


def value_function_forward(state, params, *, block_b=512):
    """state: (B, D) float32.  params: dict of w1,b1,w2,b2,w3,b3 (f32).

    Returns value estimates of shape (B,), matching
    `self.network(state).squeeze(-1)` in the PyTorch module.
    """
    B, D = state.shape
    H = params["w1"].shape[1]

    # Hardware-friendly padded sizes (zero padding preserves the math:
    # padded hidden units see zero weights/biases and ReLU(0) = 0).
    D_p = _round_up(max(D, 8), 8)          # sublane dim of w1 / lane dim of x
    H_p = _round_up(max(H, 128), 128)      # lane dim of h1/h2 and the weights
    TM = min(block_b, _round_up(B, 8))     # batch tile (pipelined over grid)
    B_p = _round_up(B, TM)

    x = state
    if (B_p, D_p) != (B, D):
        x = jnp.pad(x, ((0, B_p - B), (0, D_p - D)))

    # Weights for the two MXU matmuls in bf16 (half the DMA bytes, native MXU
    # dtype on v5e/v6e/v7x); biases and the final projection row stay f32.
    w1 = jnp.pad(params["w1"], ((0, D_p - D), (0, H_p - H))).astype(jnp.bfloat16)
    b1 = jnp.pad(params["b1"], (0, H_p - H)).reshape(1, H_p)
    w2 = jnp.pad(params["w2"], ((0, H_p - H), (0, H_p - H))).astype(jnp.bfloat16)
    b2 = jnp.pad(params["b2"], (0, H_p - H)).reshape(1, H_p)
    w3 = jnp.pad(params["w3"][:, 0], (0, H_p - H)).reshape(1, H_p)  # f32 row
    b3 = params["b3"].reshape(1, 1)                                  # SMEM scalar

    const = lambda i: (0, 0)  # weights/biases: same block every step -> resident

    out = pl.pallas_call(
        _value_mlp_kernel,
        out_shape=jax.ShapeDtypeStruct((B_p, 1), jnp.float32),
        grid=(B_p // TM,),
        in_specs=[
            pl.BlockSpec((TM, D_p), lambda i: (i, 0)),           # state tile
            pl.BlockSpec((D_p, H_p), const),                     # w1 (bf16)
            pl.BlockSpec((1, H_p), const),                       # b1
            pl.BlockSpec((H_p, H_p), const),                     # w2 (bf16)
            pl.BlockSpec((1, H_p), const),                       # b2
            pl.BlockSpec((1, H_p), const),                       # w3 row (f32)
            pl.BlockSpec(memory_space=pltpu.MemorySpace.SMEM),   # b3 scalar
        ],
        out_specs=pl.BlockSpec((TM, 1), lambda i: (i, 0)),
        compiler_params=pltpu.CompilerParams(
            # Batch tiles are independent -> shard across TCs on v7x megacore.
            dimension_semantics=("parallel",),
        ),
    )(x, w1, b1, w2, b2, w3, b3)

    # TODO(synk): for store-bound cases, present a lane-dense (1, TM) output
    # layout per tile instead of the (TM, 1) column (masked stores amortized
    # here by keeping TM large).
    return out[:B, 0]  # squeeze(-1), drop batch padding


def init_params(key, state_dim, hidden_dim=128):
    """Deterministic synthetic init mirroring nn.Linear parameter shapes."""
    k1, k2, k3, k4, k5, k6 = jax.random.split(key, 6)
    s1 = 1.0 / jnp.sqrt(state_dim)
    s2 = 1.0 / jnp.sqrt(hidden_dim)
    return {
        "w1": jax.random.uniform(k1, (state_dim, hidden_dim), jnp.float32, -s1, s1),
        "b1": jax.random.uniform(k2, (hidden_dim,), jnp.float32, -s1, s1),
        "w2": jax.random.uniform(k3, (hidden_dim, hidden_dim), jnp.float32, -s2, s2),
        "b2": jax.random.uniform(k4, (hidden_dim,), jnp.float32, -s2, s2),
        "w3": jax.random.uniform(k5, (hidden_dim, 1), jnp.float32, -s2, s2),
        "b3": jax.random.uniform(k6, (1,), jnp.float32, -s2, s2),
    }


if __name__ == "__main__":
    key = jax.random.PRNGKey(0)
    k_params, k_state = jax.random.split(key)

    # Small shapes; hidden_dim=128 matches the module default and fills lanes.
    batch, state_dim, hidden_dim = 64, 16, 128
    params = init_params(k_params, state_dim, hidden_dim)
    state = jax.random.normal(k_state, (batch, state_dim), dtype=jnp.float32)

    values = value_function_forward(state, params)
    jax.block_until_ready(values)

    # Pure-JAX f32 reference (same math as the PyTorch module).
    h1 = jnp.maximum(state @ params["w1"] + params["b1"], 0.0)
    h2 = jnp.maximum(h1 @ params["w2"] + params["b2"], 0.0)
    ref = (h2 @ params["w3"] + params["b3"])[:, 0]

    assert values.shape == (batch,)
    # bf16 matmul inputs (with f32 accumulation) -> loosened tolerance vs f32.
    assert jnp.allclose(values, ref, atol=2e-2, rtol=2e-2), (
        float(jnp.max(jnp.abs(values - ref))))

    print("KERNEL_OK")
</pallas_src>

<mosaic_0001>
module attributes {stable_mosaic.version = 11 : i64} {
  func.func @_value_mlp_kernel(%arg0: i32, %arg1: memref<64x16xf32, #tpu.memory_space<vmem>>, %arg2: memref<16x128xbf16, #tpu.memory_space<vmem>>, %arg3: memref<1x128xf32, #tpu.memory_space<vmem>>, %arg4: memref<128x128xbf16, #tpu.memory_space<vmem>>, %arg5: memref<1x128xf32, #tpu.memory_space<vmem>>, %arg6: memref<1x128xf32, #tpu.memory_space<vmem>>, %arg7: memref<1x1xf32, #tpu.memory_space<smem>>, %arg8: memref<64x1xf32, #tpu.memory_space<vmem>>) attributes {dimension_semantics = [#tpu.dimension_semantics<parallel>], iteration_bounds = array<i64: 1>, scalar_prefetch = 0 : i64, scratch_operands = 0 : i64, tpu.core_type = #tpu.core_type<tc>, window_params = [{transform_indices = @transform_0, window_bounds = array<i64: 64, 16>}, {pipeline_mode = #tpu.pipeline_mode<synchronous>, transform_indices = @transform_1, window_bounds = array<i64: 16, 128>}, {pipeline_mode = #tpu.pipeline_mode<synchronous>, transform_indices = @transform_2, window_bounds = array<i64: 1, 128>}, {pipeline_mode = #tpu.pipeline_mode<synchronous>, transform_indices = @transform_3, window_bounds = array<i64: 128, 128>}, {pipeline_mode = #tpu.pipeline_mode<synchronous>, transform_indices = @transform_4, window_bounds = array<i64: 1, 128>}, {pipeline_mode = #tpu.pipeline_mode<synchronous>, transform_indices = @transform_5, window_bounds = array<i64: 1, 128>}, {transform_indices = @transform_6, window_bounds = array<i64: 1, 1>}, {transform_indices = @transform_7, window_bounds = array<i64: 64, 1>}]} {
    %c0 = arith.constant 0 : index
    %c0_0 = arith.constant 0 : index
    %0 = vector.load %arg1[%c0, %c0_0] : memref<64x16xf32, #tpu.memory_space<vmem>>, vector<64x16xf32>
    %1 = arith.truncf %0 : vector<64x16xf32> to vector<64x16xbf16>
    %c0_1 = arith.constant 0 : index
    %c0_2 = arith.constant 0 : index
    %2 = vector.load %arg2[%c0_1, %c0_2] : memref<16x128xbf16, #tpu.memory_space<vmem>>, vector<16x128xbf16>
    %cst = arith.constant dense<0.000000e+00> : vector<64x128xf32>
    %3 = tpu.matmul %1, %2, %cst {dimension_numbers = #tpu.dot_dimension_numbers<[1], [0], [0], [1], [0, 0, 1, 1], [], []>} : vector<64x16xbf16>, vector<16x128xbf16>, vector<64x128xf32> -> vector<64x128xf32>
    %c0_3 = arith.constant 0 : index
    %c0_4 = arith.constant 0 : index
    %4 = vector.load %arg3[%c0_3, %c0_4] : memref<1x128xf32, #tpu.memory_space<vmem>>, vector<1x128xf32>
    %5 = vector.broadcast %4 : vector<1x128xf32> to vector<64x128xf32>
    %6 = arith.addf %3, %5 : vector<64x128xf32>
    %cst_5 = arith.constant 0.000000e+00 : f32
    %7 = vector.broadcast %cst_5 : f32 to vector<64x128xf32>
    %8 = arith.maximumf %6, %7 : vector<64x128xf32>
    %9 = arith.truncf %8 : vector<64x128xf32> to vector<64x128xbf16>
    %c0_6 = arith.constant 0 : index
    %c0_7 = arith.constant 0 : index
    %10 = vector.load %arg4[%c0_6, %c0_7] : memref<128x128xbf16, #tpu.memory_space<vmem>>, vector<128x128xbf16>
    %cst_8 = arith.constant dense<0.000000e+00> : vector<64x128xf32>
    %11 = tpu.matmul %9, %10, %cst_8 {dimension_numbers = #tpu.dot_dimension_numbers<[1], [0], [0], [1], [0, 0, 1, 1], [], []>} : vector<64x128xbf16>, vector<128x128xbf16>, vector<64x128xf32> -> vector<64x128xf32>
    %c0_9 = arith.constant 0 : index
    %c0_10 = arith.constant 0 : index
    %12 = vector.load %arg5[%c0_9, %c0_10] : memref<1x128xf32, #tpu.memory_space<vmem>>, vector<1x128xf32>
    %13 = vector.broadcast %12 : vector<1x128xf32> to vector<64x128xf32>
    %14 = arith.addf %11, %13 : vector<64x128xf32>
    %cst_11 = arith.constant 0.000000e+00 : f32
    %15 = vector.broadcast %cst_11 : f32 to vector<64x128xf32>
    %16 = arith.maximumf %14, %15 : vector<64x128xf32>
    %c0_12 = arith.constant 0 : index
    %c0_13 = arith.constant 0 : index
    %17 = vector.load %arg6[%c0_12, %c0_13] : memref<1x128xf32, #tpu.memory_space<vmem>>, vector<1x128xf32>
    %18 = vector.broadcast %17 : vector<1x128xf32> to vector<64x128xf32>
    %19 = arith.mulf %16, %18 : vector<64x128xf32>
    %cst_14 = arith.constant dense<0.000000e+00> : vector<64xf32>
    %20 = vector.multi_reduction <add>, %19, %cst_14 [1] : vector<64x128xf32> to vector<64xf32>
    %21 = vector.shape_cast %20 : vector<64xf32> to vector<64x1xf32>
    %c0_15 = arith.constant 0 : index
    %c0_16 = arith.constant 0 : index
    %22 = memref.load %arg7[%c0_15, %c0_16] : memref<1x1xf32, #tpu.memory_space<smem>>
    %23 = vector.broadcast %22 : f32 to vector<64x1xf32>
    %24 = arith.addf %21, %23 : vector<64x1xf32>
    %c0_17 = arith.constant 0 : index
    %c0_18 = arith.constant 0 : index
    %25 = vector.load %arg8[%c0_17, %c0_18] : memref<64x1xf32, #tpu.memory_space<vmem>>, vector<64x1xf32>
    tpu.vector_store %arg8[%c0_17, %c0_18], %24 {strides = array<i32>} : memref<64x1xf32, #tpu.memory_space<vmem>>, vector<64x1xf32>,
    return
  }
  func.func @transform_0(%arg0: i32) -> (i32, i32) {
    %c0_i32 = arith.constant 0 : i32
    %c0_i32_0 = arith.constant 0 : i32
    return %arg0, %c0_i32 : i32, i32
  }
  func.func @transform_1(%arg0: i32) -> (i32, i32) {
    %c0_i32 = arith.constant 0 : i32
    %c0_i32_0 = arith.constant 0 : i32
    %c0_i32_1 = arith.constant 0 : i32
    return %c0_i32, %c0_i32_0 : i32, i32
  }
  func.func @transform_2(%arg0: i32) -> (i32, i32) {
    %c0_i32 = arith.constant 0 : i32
    %c0_i32_0 = arith.constant 0 : i32
    %c0_i32_1 = arith.constant 0 : i32
    return %c0_i32, %c0_i32_0 : i32, i32
  }
  func.func @transform_3(%arg0: i32) -> (i32, i32) {
    %c0_i32 = arith.constant 0 : i32
    %c0_i32_0 = arith.constant 0 : i32
    %c0_i32_1 = arith.constant 0 : i32
    return %c0_i32, %c0_i32_0 : i32, i32
  }
  func.func @transform_4(%arg0: i32) -> (i32, i32) {
    %c0_i32 = arith.constant 0 : i32
    %c0_i32_0 = arith.constant 0 : i32
    %c0_i32_1 = arith.constant 0 : i32
    return %c0_i32, %c0_i32_0 : i32, i32
  }
  func.func @transform_5(%arg0: i32) -> (i32, i32) {
    %c0_i32 = arith.constant 0 : i32
    %c0_i32_0 = arith.constant 0 : i32
    %c0_i32_1 = arith.constant 0 : i32
    return %c0_i32, %c0_i32_0 : i32, i32
  }
  func.func @transform_6(%arg0: i32) -> (i32, i32) {
    %c0_i32 = arith.constant 0 : i32
    %c0_i32_0 = arith.constant 0 : i32
    %c0_i32_1 = arith.constant 0 : i32
    return %c0_i32, %c0_i32_0 : i32, i32
  }
  func.func @transform_7(%arg0: i32) -> (i32, i32) {
    %c0_i32 = arith.constant 0 : i32
    %c0_i32_0 = arith.constant 0 : i32
    return %arg0, %c0_i32 : i32, i32
  }
}

</mosaic_0001>

<llo_original>
// kernel: tpu_custom_call.1
$region0: #{tpu_custom_call.1}
  #allocation0 [shape = 'u32[]', space=smem, size = 0x4, offset = 0x4, fixed_abs, tag = 'smem constant byte address 0x4 - core index']
  #allocation1 [shape = 'u32[144,128]{1,0:T(1,128)}', space=vmem, size = 0x12000, scoped, tag = 'internal scratch']
  #allocation2 [shape = 'f32[1,1]{1,0:T(1,128)S(6)}', space=smem, size = 0x200, scoped, tag = 'scoped memory for tpu_custom_call.1']
  %s0 = inlined_call_operand.vmem [shape: f32[64,16], index: 0, kind: input, shape index: {}]
  %s1 = inlined_call_operand.vmem [shape: bf16[16,128], index: 1, kind: input, shape index: {}]
  %s2 = inlined_call_operand.vmem [shape: f32[1,128], index: 2, kind: input, shape index: {}]
  %s3 = inlined_call_operand.vmem [shape: bf16[128,128], index: 3, kind: input, shape index: {}]
  %s4 = inlined_call_operand.vmem [shape: f32[1,128], index: 4, kind: input, shape index: {}]
  %s5 = inlined_call_operand.vmem [shape: f32[1,128], index: 5, kind: input, shape index: {}]
  %s6 = inlined_call_operand.<no memory space> [shape: f32[1,1], index: 6, kind: input, shape index: {}]
  %s7 = inlined_call_operand.vmem [shape: f32[64,1], index: 7, kind: output, shape index: {}]
  %s8 = sld [smem:[#allocation0]]
  $region38: #{tpu_custom_call.1} parent=0
    _
  %s10 = ssub.s32 1, %s8
  %s11 = scalar_select 0, %s10, %s8
  %12 = sst [smem:[#allocation2]] %s6
  // Predicated region
  $region2: #{tpu_custom_call.1} parent=0 // pred_check
    _
  $region3: #{tpu_custom_call.1} parent=0 // pred_check_branch
    %14 = sbr.rel (0) target = $region5
  $region4: #{tpu_custom_call.1} parent=0 // pred_region
    _
  $region5: #{tpu_custom_call.1} parent=0 // pred_fallthru
    _
  // Predicated region
  $region6: #{tpu_custom_call.1} parent=0 // pred_check
    _
  $region7: #{tpu_custom_call.1} parent=0 // pred_check_branch
    %16 = sbr.rel (0) target = $region9
  $region8: #{tpu_custom_call.1} parent=0 // pred_region
    _
  $region9: #{tpu_custom_call.1} parent=0 // pred_fallthru
    _
  // Predicated region
  $region10: #{tpu_custom_call.1} parent=0 // pred_check
    _
  $region11: #{tpu_custom_call.1} parent=0 // pred_check_branch
    %18 = sbr.rel (0) target = $region13
  $region12: #{tpu_custom_call.1} parent=0 // pred_region
    _
  $region13: #{tpu_custom_call.1} parent=0 // pred_fallthru
    _
  // Predicated region
  $region14: #{tpu_custom_call.1} parent=0 // pred_check
    _
  $region15: #{tpu_custom_call.1} parent=0 // pred_check_branch
    %20 = sbr.rel (0) target = $region17
  $region16: #{tpu_custom_call.1} parent=0 // pred_region
    _
  $region17: #{tpu_custom_call.1} parent=0 // pred_fallthru
    _
  // Predicated region
  $region18: #{tpu_custom_call.1} parent=0 // pred_check
    _
  $region19: #{tpu_custom_call.1} parent=0 // pred_check_branch
    %22 = sbr.rel (0) target = $region21
  $region20: #{tpu_custom_call.1} parent=0 // pred_region
    _
  $region21: #{tpu_custom_call.1} parent=0 // pred_fallthru
    _
  // Predicated region
  $region22: #{tpu_custom_call.1} parent=0 // pred_check
    _
  $region23: #{tpu_custom_call.1} parent=0 // pred_check_branch
    %24 = sbr.rel (0) target = $region25
  $region24: #{tpu_custom_call.1} parent=0 // pred_region
    _
  $region25: #{tpu_custom_call.1} parent=0 // pred_fallthru
    _
  // Predicated region
  $region26: #{tpu_custom_call.1} parent=0 // pred_check
    _
  $region27: #{tpu_custom_call.1} parent=0 // pred_check_branch
    %26 = sbr.rel (0) target = $region29
  $region28: #{tpu_custom_call.1} parent=0 // pred_region
    _
  $region29: #{tpu_custom_call.1} parent=0 // pred_fallthru
    _
  %v28 = vld [vmem:[%s0] sm:$0xff]
  %v29 = vld [vmem:[%s0 + $0x8] sm:$0xff]
  %v30 = vld [vmem:[%s0 + $0x10] sm:$0xff]
  %v31 = vld [vmem:[%s0 + $0x18] sm:$0xff]
  %v32 = vld [vmem:[%s0 + $0x20] sm:$0xff]
  %v33 = vld [vmem:[%s0 + $0x28] sm:$0xff]
  %v34 = vld [vmem:[%s0 + $0x30] sm:$0xff]
  %v35 = vld [vmem:[%s0 + $0x38] sm:$0xff]
  %v36 = vpack.c.bf16 %v29, %v28
  %v37 = vpack.c.bf16 %v31, %v30
  %v38 = vpack.c.bf16 %v33, %v32
  %v39 = vpack.c.bf16 %v35, %v34
  %v40 = vld [vmem:[%s1] sm:$0xf]
  %v41 = vld [vmem:[%s1 + $0x4] sm:$0xf]
  %v42 = vld [vmem:[%s2] sm:$0x1]
  %v44 = vlaneseq
  %v45 = vshrl.u32 %v44, 7
  %v46 = vsub.s32 0, %v45
  %v47 = vrot.slane %v42, %v46
  %v51 = vunpack.c.l.b16 %v40
  %v52 = vunpack.c.l.b16 %v41
  %v53 = vpack.c.b16 %v52, %v51
  %vm55 = vcmask 130048
  %v57 = vsel %vm55, %v36, 0
  %v60 = vsel %vm55, %v37, 0
  %v63 = vsel %vm55, %v38, 0
  %v66 = vsel %vm55, %v39, 0
  %68 = vmatprep.subr.bf16.mxu0 0
  %69 = vmatpush1.bf16.msra.mxu0 %v53
  %70 = vmatprep.subr.bf16.mxu0 0
  %71 = vmatpush1.bf16.msra.mxu0 0
  %72 = vmatprep.subr.bf16.mxu0 0
  %73 = vmatpush1.bf16.msra.mxu0 0
  %74 = vmatprep.subr.bf16.mxu0 0
  %75 = vmatpush1.bf16.msra.mxu0 0
  %76 = vmatprep.subr.bf16.mxu0 0
  %77 = vmatpush1.bf16.msra.mxu0 0
  %78 = vmatprep.subr.bf16.mxu0 0
  %79 = vmatpush1.bf16.msra.mxu0 0
  %80 = vmatprep.subr.bf16.mxu0 0
  %81 = vmatpush1.bf16.msra.mxu0 0
  %82 = vmatprep.subr.bf16.mxu0 0
  %83 = vmatpush1.bf16.msra.mxu0 0
  %84 = vmatprep.subr.bf16.mxu0 0
  %85 = vmatpush1.bf16.msra.mxu0 0
  %86 = vmatprep.subr.bf16.mxu0 0
  %87 = vmatpush1.bf16.msra.mxu0 0
  %88 = vmatprep.subr.bf16.mxu0 0
  %89 = vmatpush1.bf16.msra.mxu0 0
  %90 = vmatprep.subr.bf16.mxu0 0
  %91 = vmatpush1.bf16.msra.mxu0 0
  %92 = vmatprep.subr.bf16.mxu0 0
  %93 = vmatpush1.bf16.msra.mxu0 0
  %94 = vmatprep.subr.bf16.mxu0 0
  %95 = vmatpush1.bf16.msra.mxu0 0
  %96 = vmatprep.subr.bf16.mxu0 0
  %97 = vmatpush1.bf16.msra.mxu0 0
  %98 = vmatprep.subr.bf16.mxu0 0
  %99 = vmatpush1.bf16.msra.mxu0 0
  %100 = vmatprep.mubr.bf16.mxu0 0
  %101 = vmatmul.mubr.bf16.gmra.mrb[0].mxu0 %v57
  %v102 = vpop.f32.mrb[0].mxu0
  %v103 = vadd.f32 %v47, %v102
  %v104 = vpop.f32.mrb[0].mxu0
  %v105 = vpop.f32.mrb[0].mxu0
  %v106 = vadd.f32 %v47, %v105
  %v107 = vpop.f32.mrb[0].mxu0
  %108 = vmatprep.mubr.bf16.mxu0 0
  %109 = vmatmul.mubr.bf16.gmra.mrb[0].mxu0 %v60
  %v110 = vpop.f32.mrb[0].mxu0
  %v111 = vadd.f32 %v47, %v110
  %v112 = vpop.f32.mrb[0].mxu0
  %v113 = vpop.f32.mrb[0].mxu0
  %v114 = vadd.f32 %v47, %v113
  %v115 = vpop.f32.mrb[0].mxu0
  %116 = vmatprep.mubr.bf16.mxu0 0
  %117 = vmatmul.mubr.bf16.gmra.mrb[0].mxu0 %v63
  %v118 = vpop.f32.mrb[0].mxu0
  %v119 = vadd.f32 %v47, %v118
  %v120 = vpop.f32.mrb[0].mxu0
  %v121 = vpop.f32.mrb[0].mxu0
  %v122 = vadd.f32 %v47, %v121
  %v123 = vpop.f32.mrb[0].mxu0
  %124 = vmatprep.mubr.bf16.mxu0 0
  %125 = vmatmul.mubr.bf16.gmra.mrb[0].mxu0 %v66
  %v126 = vpop.f32.mrb[0].mxu0
  %v127 = vadd.f32 %v47, %v126
  %v128 = vpop.f32.mrb[0].mxu0
  %v129 = vpop.f32.mrb[0].mxu0
  %v130 = vadd.f32 %v47, %v129
  %v131 = vpop.f32.mrb[0].mxu0
  %132 = vdwg.mxu0
  %v133 = vmax.f32 %v103, 0.0
  %v134 = vmax.f32 %v106, 0.0
  %v135 = vmax.f32 %v111, 0.0
  %v136 = vmax.f32 %v114, 0.0
  %v137 = vmax.f32 %v119, 0.0
  %v138 = vmax.f32 %v122, 0.0
  %v139 = vmax.f32 %v127, 0.0
  %v140 = vmax.f32 %v130, 0.0
  %v141 = vpack.c.bf16 %v134, %v133
  %v142 = vpack.c.bf16 %v136, %v135
  %v143 = vpack.c.bf16 %v138, %v137
  %v144 = vpack.c.bf16 %v140, %v139
  %v145 = vld [vmem:[%s3] sm:$0xf]
  %v146 = vld [vmem:[%s3 + $0x4] sm:$0xf]
  %v147 = vld [vmem:[%s3 + $0x8] sm:$0xf]
  %v148 = vld [vmem:[%s3 + $0xc] sm:$0xf]
  %v149 = vld [vmem:[%s3 + $0x10] sm:$0xf]
  %v150 = vld [vmem:[%s3 + $0x14] sm:$0xf]
  %v151 = vld [vmem:[%s3 + $0x18] sm:$0xf]
  %v152 = vld [vmem:[%s3 + $0x1c] sm:$0xf]
  %v153 = vld [vmem:[%s3 + $0x20] sm:$0xf]
  %v154 = vld [vmem:[%s3 + $0x24] sm:$0xf]
  %v155 = vld [vmem:[%s3 + $0x28] sm:$0xf]
  %v156 = vld [vmem:[%s3 + $0x2c] sm:$0xf]
  %v157 = vld [vmem:[%s3 + $0x30] sm:$0xf]
  %v158 = vld [vmem:[%s3 + $0x34] sm:$0xf]
  %v159 = vld [vmem:[%s3 + $0x38] sm:$0xf]
  %v160 = vld [vmem:[%s3 + $0x3c] sm:$0xf]
  %v161 = vld [vmem:[%s4] sm:$0x1]
  %v163 = vlaneseq
  %v164 = vshrl.u32 %v163, 7
  %v165 = vsub.s32 0, %v164
  %v166 = vrot.slane %v161, %v165
  %v184 = vunpack.c.l.b16 %v145
  %v185 = vunpack.c.l.b16 %v146
  %v186 = vunpack.c.l.b16 %v147
  %v187 = vunpack.c.l.b16 %v148
  %v188 = vunpack.c.l.b16 %v149
  %v189 = vunpack.c.l.b16 %v150
  %v190 = vunpack.c.l.b16 %v151
  %v191 = vunpack.c.l.b16 %v152
  %v192 = vunpack.c.l.b16 %v153
  %v193 = vunpack.c.l.b16 %v154
  %v194 = vunpack.c.l.b16 %v155
  %v195 = vunpack.c.l.b16 %v156
  %v196 = vunpack.c.l.b16 %v157
  %v197 = vunpack.c.l.b16 %v158
  %v198 = vunpack.c.l.b16 %v159
  %v199 = vunpack.c.l.b16 %v160
  %v200 = vpack.c.b16 %v185, %v184
  %v201 = vpack.c.b16 %v187, %v186
  %v202 = vpack.c.b16 %v189, %v188
  %v203 = vpack.c.b16 %v191, %v190
  %v204 = vpack.c.b16 %v193, %v192
  %v205 = vpack.c.b16 %v195, %v194
  %v206 = vpack.c.b16 %v197, %v196
  %v207 = vpack.c.b16 %v199, %v198
  %216 = vmatprep.subr.bf16.mxu0 0
  %217 = vmatpush1.bf16.msra.mxu0 %v200
  %218 = vmatprep.subr.bf16.mxu0 0
  %219 = vmatpush1.bf16.msra.mxu0 %v201
  %220 = vmatprep.subr.bf16.mxu0 0
  %221 = vmatpush1.bf16.msra.mxu0 %v202
  %222 = vmatprep.subr.bf16.mxu0 0
  %223 = vmatpush1.bf16.msra.mxu0 %v203
  %224 = vmatprep.subr.bf16.mxu0 0
  %225 = vmatpush1.bf16.msra.mxu0 %v204
  %226 = vmatprep.subr.bf16.mxu0 0
  %227 = vmatpush1.bf16.msra.mxu0 %v205
  %228 = vmatprep.subr.bf16.mxu0 0
  %229 = vmatpush1.bf16.msra.mxu0 %v206
  %230 = vmatprep.subr.bf16.mxu0 0
  %231 = vmatpush1.bf16.msra.mxu0 %v207
  %232 = vmatprep.subr.bf16.mxu0 0
  %233 = vmatpush1.bf16.msra.mxu0 0
  %234 = vmatprep.subr.bf16.mxu0 0
  %235 = vmatpush1.bf16.msra.mxu0 0
  %236 = vmatprep.subr.bf16.mxu0 0
  %237 = vmatpush1.bf16.msra.mxu0 0
  %238 = vmatprep.subr.bf16.mxu0 0
  %239 = vmatpush1.bf16.msra.mxu0 0
  %240 = vmatprep.subr.bf16.mxu0 0
  %241 = vmatpush1.bf16.msra.mxu0 0
  %242 = vmatprep.subr.bf16.mxu0 0
  %243 = vmatpush1.bf16.msra.mxu0 0
  %244 = vmatprep.subr.bf16.mxu0 0
  %245 = vmatpush1.bf16.msra.mxu0 0
  %246 = vmatprep.subr.bf16.mxu0 0
  %247 = vmatpush1.bf16.msra.mxu0 0
  %248 = vmatprep.mubr.bf16.mxu0 0
  %249 = vmatmul.mubr.bf16.gmra.mrb[0].mxu0 %v141
  %v250 = vpop.f32.mrb[0].mxu0
  %v251 = vadd.f32 %v166, %v250
  %v252 = vpop.f32.mrb[0].mxu0
  %v253 = vpop.f32.mrb[0].mxu0
  %v254 = vadd.f32 %v166, %v253
  %v255 = vpop.f32.mrb[0].mxu0
  %256 = vmatprep.mubr.bf16.mxu0 0
  %257 = vmatmul.mubr.bf16.gmra.mrb[0].mxu0 %v142
  %v258 = vpop.f32.mrb[0].mxu0
  %v259 = vadd.f32 %v166, %v258
  %v260 = vpop.f32.mrb[0].mxu0
  %v261 = vpop.f32.mrb[0].mxu0
  %v262 = vadd.f32 %v166, %v261
  %v263 = vpop.f32.mrb[0].mxu0
  %264 = vmatprep.mubr.bf16.mxu0 0
  %265 = vmatmul.mubr.bf16.gmra.mrb[0].mxu0 %v143
  %v266 = vpop.f32.mrb[0].mxu0
  %v267 = vadd.f32 %v166, %v266
  %v268 = vpop.f32.mrb[0].mxu0
  %v269 = vpop.f32.mrb[0].mxu0
  %v270 = vadd.f32 %v166, %v269
  %v271 = vpop.f32.mrb[0].mxu0
  %272 = vmatprep.mubr.bf16.mxu0 0
  %273 = vmatmul.mubr.bf16.gmra.mrb[0].mxu0 %v144
  %v274 = vpop.f32.mrb[0].mxu0
  %v275 = vadd.f32 %v166, %v274
  %v276 = vpop.f32.mrb[0].mxu0
  %v277 = vpop.f32.mrb[0].mxu0
  %v278 = vadd.f32 %v166, %v277
  %v279 = vpop.f32.mrb[0].mxu0
  %280 = vdwg.mxu0
  %v281 = vmax.f32 %v251, 0.0
  %v282 = vmax.f32 %v254, 0.0
  %v283 = vmax.f32 %v259, 0.0
  %v284 = vmax.f32 %v262, 0.0
  %v285 = vmax.f32 %v267, 0.0
  %v286 = vmax.f32 %v270, 0.0
  %v287 = vmax.f32 %v275, 0.0
  %v288 = vmax.f32 %v278, 0.0
  %v289 = vld [vmem:[%s5] sm:$0x1]
  %v291 = vlaneseq
  %v292 = vshrl.u32 %v291, 7
  %v293 = vsub.s32 0, %v292
  %v294 = vrot.slane %v289, %v293
  %v296 = vmul.f32 %v281, %v294
  %v297 = vmul.f32 %v282, %v294
  %v298 = vmul.f32 %v283, %v294
  %v299 = vmul.f32 %v284, %v294
  %v300 = vmul.f32 %v285, %v294
  %v301 = vmul.f32 %v286, %v294
  %v302 = vmul.f32 %v287, %v294
  %v303 = vmul.f32 %v288, %v294
  %304 = vadd.xlane.f32.xlu0 %v296
  %v305 = vpop.xlane.xlu0 %304
  %306 = vadd.xlane.f32.xlu0 %v297
  %v307 = vpop.xlane.xlu0 %306
  %308 = vadd.xlane.f32.xlu0 %v298
  %v309 = vpop.xlane.xlu0 %308
  %310 = vadd.xlane.f32.xlu0 %v299
  %v311 = vpop.xlane.xlu0 %310
  %312 = vadd.xlane.f32.xlu0 %v300
  %v313 = vpop.xlane.xlu0 %312
  %314 = vadd.xlane.f32.xlu0 %v301
  %v315 = vpop.xlane.xlu0 %314
  %316 = vadd.xlane.f32.xlu0 %v302
  %v317 = vpop.xlane.xlu0 %316
  %318 = vadd.xlane.f32.xlu0 %v303
  %v319 = vpop.xlane.xlu0 %318
  %s320 = sld [smem:[#allocation2]]
  %v321 = vstv %s320
  %v322 = vadd.f32 %v305, %v321
  %v323 = vadd.f32 %v307, %v321
  %v324 = vadd.f32 %v309, %v321
  %v325 = vadd.f32 %v311, %v321
  %v326 = vadd.f32 %v313, %v321
  %v327 = vadd.f32 %v315, %v321
  %v328 = vadd.f32 %v317, %v321
  %v329 = vadd.f32 %v319, %v321
  %vm330 = vcmask 7168
  %331 = vst.msk [vmem:[%s7] sm:$0xff] %vm330, %v322
  %332 = vst.msk [vmem:[%s7 + $0x8] sm:$0xff] %vm330, %v323
  %333 = vst.msk [vmem:[%s7 + $0x10] sm:$0xff] %vm330, %v324
  %334 = vst.msk [vmem:[%s7 + $0x18] sm:$0xff] %vm330, %v325
  %335 = vst.msk [vmem:[%s7 + $0x20] sm:$0xff] %vm330, %v326
  %336 = vst.msk [vmem:[%s7 + $0x28] sm:$0xff] %vm330, %v327
  %337 = vst.msk [vmem:[%s7 + $0x30] sm:$0xff] %vm330, %v328
  %338 = vst.msk [vmem:[%s7 + $0x38] sm:$0xff] %vm330, %v329
  // Predicated region
  $region30: #{tpu_custom_call.1} parent=0 // pred_check
    _
  $region31: #{tpu_custom_call.1} parent=0 // pred_check_branch
    %340 = sbr.rel (0) target = $region33
  $region32: #{tpu_custom_call.1} parent=0 // pred_region
    _
  $region33: #{tpu_custom_call.1} parent=0 // pred_fallthru
    _
  // Predicated region
  $region34: #{tpu_custom_call.1} parent=0 // pred_check
    _
  $region35: #{tpu_custom_call.1} parent=0 // pred_check_branch
    %342 = sbr.rel (0) target = $region37
  $region36: #{tpu_custom_call.1} parent=0 // pred_region
    _
  $region37: #{tpu_custom_call.1} parent=0 // pred_fallthru
    _

</llo_original>
